<compile_context>
chip_gen: v7x
topology: tpu7x:2x2x1
jax: 0.10.0
libtpu: 0.0.40
codegen_flags: <defaults>
</compile_context>

<pallas_src>
import math

import jax
import jax.numpy as jnp
from jax.experimental import pallas as pl
from jax.experimental.pallas import tpu as pltpu


def _mod_conv1x1_kernel(w_ref, x_ref, o_ref):
    # w_ref: (1, C_out, C_in)   per-batch modulated (and demodulated) weights
    # x_ref: (1, C_in, T)       current batch, current HW tile (spatial on lanes)
    # o_ref: (1, C_out, T)
    o_ref[0] = jnp.dot(
        w_ref[0], x_ref[0], preferred_element_type=jnp.float32
    ).astype(o_ref.dtype)


def _pick_tile_hw(hw: int, target: int) -> int:
    """Largest multiple of 128 that divides hw and is <= target (or hw itself)."""
    if hw <= target:
        return hw
    t = (target // 128) * 128
    while t >= 128:
        if hw % t == 0:
            return t
        t -= 128
    return hw


def conv2d_weight_modulate(x, s, weight, *, demodulate=True, eps=1e-8,
                           tile_hw=2048):
    """Forward pass of Conv2dWeightModulate (kernel_size == 1).

    x:      (B, C_in, H, W)
    s:      (B, C_in)            per-sample style / modulation
    weight: (C_out, C_in, k, k)  raw parameter (scaled by 1/sqrt(C_in*k*k) here)
    Returns (B, C_out, H, W).
    """
    B, C_in, H, W = x.shape
    C_out, _, kh, kw = weight.shape
    # TODO(synk): kernel_size > 1 needs a spatial-halo (or im2col) Pallas path;
    # only the 1x1 case used by ToRGB/StyleGAN heads is implemented here.
    assert kh == 1 and kw == 1, "Pallas path specialized to kernel_size == 1"
    HW = H * W

    # --- weight modulation / demodulation: tiny (B, C_out, C_in) math, plain JAX
    scale = 1.0 / math.sqrt(C_in * kh * kw)
    w_flat = weight.reshape(C_out, C_in) * scale                  # (C_out, C_in)
    w_mod = w_flat[None, :, :] * s[:, None, :]                    # (B, C_out, C_in)
    if demodulate:
        sigma_inv = jax.lax.rsqrt(
            jnp.sum(w_mod * w_mod, axis=2, keepdims=True) + eps)  # (B, C_out, 1)
        w_mod = w_mod * sigma_inv
    w_mod = w_mod.astype(x.dtype)

    # --- pure reshape (no transpose): NCHW -> (B, C, HW), spatial on lanes
    x_flat = x.reshape(B, C_in, HW)

    t_hw = _pick_tile_hw(HW, tile_hw)
    assert HW % t_hw == 0
    n_tiles = HW // t_hw

    itemsize = jnp.dtype(x.dtype).itemsize
    cost = pl.CostEstimate(
        flops=2 * B * C_out * C_in * HW,
        transcendentals=0,
        bytes_accessed=(x_flat.size + B * C_out * HW + w_mod.size) * itemsize,
    )

    out_flat = pl.pallas_call(
        _mod_conv1x1_kernel,
        out_shape=jax.ShapeDtypeStruct((B, C_out, HW), x.dtype),
        grid_spec=pltpu.PrefetchScalarGridSpec(
            num_scalar_prefetch=0,
            grid=(B, n_tiles),                     # HW tiles innermost
            in_specs=[
                # per-batch weights: index depends only on b -> stays resident
                pl.BlockSpec((1, C_out, C_in), lambda b, t: (b, 0, 0)),
                # x tile: channels on sublanes, TILE_HW (mult. of 128) on lanes
                pl.BlockSpec((1, C_in, t_hw), lambda b, t: (b, 0, t)),
            ],
            out_specs=pl.BlockSpec((1, C_out, t_hw), lambda b, t: (b, 0, t)),
        ),
        compiler_params=pltpu.CompilerParams(
            dimension_semantics=("parallel", "parallel")),
        cost_estimate=cost,
    )(w_mod, x_flat)

    # pure reshape back: (B, C_out, HW) -> NCHW
    return out_flat.reshape(B, C_out, H, W)


def conv2d_weight_modulate_ref(x, s, weight, *, demodulate=True, eps=1e-8):
    """Pure-jnp reference mirroring the PyTorch forward (kernel_size == 1)."""
    B, C_in, H, W = x.shape
    C_out, _, kh, kw = weight.shape
    scale = 1.0 / math.sqrt(C_in * kh * kw)
    w = weight[None, :, :, :, :] * scale * s[:, None, :, None, None]
    if demodulate:
        sigma_inv = jax.lax.rsqrt(
            jnp.sum(w * w, axis=(2, 3, 4), keepdims=True) + eps)
        w = w * sigma_inv
    w2 = w.reshape(B, C_out, C_in)
    return jnp.einsum("boi,bihw->bohw", w2, x)


if __name__ == "__main__":
    B, C_in, C_out, H, W = 2, 4, 3, 16, 16
    K = 1  # kernel_size

    key = jax.random.PRNGKey(0)
    k_x, k_s, k_w = jax.random.split(key, 3)

    x = jax.random.normal(k_x, (B, C_in, H, W), dtype=jnp.float32)
    s = jax.random.normal(k_s, (B, C_in), dtype=jnp.float32) + 1.0
    weight = jax.random.normal(k_w, (C_out, C_in, K, K), dtype=jnp.float32)

    # demodulate=True (module default); tile_hw=128 to exercise the HW-tiled grid
    out_d = conv2d_weight_modulate(x, s, weight, demodulate=True, tile_hw=128)
    out_d = jax.block_until_ready(out_d)
    ref_d = conv2d_weight_modulate_ref(x, s, weight, demodulate=True)
    assert out_d.shape == (B, C_out, H, W)
    assert jnp.allclose(out_d, ref_d, atol=1e-5, rtol=1e-5), "demodulate=True mismatch"

    # demodulate=False path (used by ToRGB)
    out_n = conv2d_weight_modulate(x, s, weight, demodulate=False, tile_hw=128)
    out_n = jax.block_until_ready(out_n)
    ref_n = conv2d_weight_modulate_ref(x, s, weight, demodulate=False)
    assert jnp.allclose(out_n, ref_n, atol=1e-5, rtol=1e-5), "demodulate=False mismatch"

    print("KERNEL_OK")
</pallas_src>

<mosaic_0001>
module attributes {stable_mosaic.version = 11 : i64} {
  func.func @_mod_conv1x1_kernel(%arg0: i32, %arg1: i32, %arg2: memref<1x3x4xf32, #tpu.memory_space<vmem>>, %arg3: memref<1x4x128xf32, #tpu.memory_space<vmem>>, %arg4: memref<1x3x128xf32, #tpu.memory_space<vmem>>) attributes {dimension_semantics = [#tpu.dimension_semantics<parallel>, #tpu.dimension_semantics<parallel>], iteration_bounds = array<i64: 2, 2>, scalar_prefetch = 0 : i64, scratch_operands = 0 : i64, tpu.core_type = #tpu.core_type<tc>, window_params = [{transform_indices = @transform_0, window_bounds = array<i64: 1, 3, 4>}, {transform_indices = @transform_1, window_bounds = array<i64: 1, 4, 128>}, {transform_indices = @transform_2, window_bounds = array<i64: 1, 3, 128>}]} {
    %c0 = arith.constant 0 : index
    %c0_0 = arith.constant 0 : index
    %c0_1 = arith.constant 0 : index
    %0 = vector.load %arg2[%c0, %c0_0, %c0_1] : memref<1x3x4xf32, #tpu.memory_space<vmem>>, vector<1x3x4xf32>
    %1 = vector.shape_cast %0 : vector<1x3x4xf32> to vector<3x4xf32>
    %c0_2 = arith.constant 0 : index
    %c0_3 = arith.constant 0 : index
    %c0_4 = arith.constant 0 : index
    %2 = vector.load %arg3[%c0_2, %c0_3, %c0_4] : memref<1x4x128xf32, #tpu.memory_space<vmem>>, vector<1x4x128xf32>
    %3 = vector.shape_cast %2 : vector<1x4x128xf32> to vector<4x128xf32>
    %cst = arith.constant dense<0.000000e+00> : vector<3x128xf32>
    %4 = tpu.matmul %1, %3, %cst {dimension_numbers = #tpu.dot_dimension_numbers<[1], [0], [0], [1], [0, 0, 1, 1], [], []>} : vector<3x4xf32>, vector<4x128xf32>, vector<3x128xf32> -> vector<3x128xf32>
    %c0_5 = arith.constant 0 : index
    %c0_6 = arith.constant 0 : index
    %c0_7 = arith.constant 0 : index
    %5 = vector.load %arg4[%c0_5, %c0_6, %c0_7] : memref<1x3x128xf32, #tpu.memory_space<vmem>>, vector<1x3x128xf32>
    %6 = vector.shape_cast %5 : vector<1x3x128xf32> to vector<3x128xf32>
    %7 = vector.shape_cast %4 : vector<3x128xf32> to vector<1x3x128xf32>
    tpu.vector_store %arg4[%c0_5, %c0_6, %c0_7], %7 {strides = array<i32>} : memref<1x3x128xf32, #tpu.memory_space<vmem>>, vector<1x3x128xf32>,
    return
  }
  func.func @transform_0(%arg0: i32, %arg1: i32) -> (i32, i32, i32) {
    %c0_i32 = arith.constant 0 : i32
    %c0_i32_0 = arith.constant 0 : i32
    %c0_i32_1 = arith.constant 0 : i32
    return %arg0, %c0_i32, %c0_i32_0 : i32, i32, i32
  }
  func.func @transform_1(%arg0: i32, %arg1: i32) -> (i32, i32, i32) {
    %c0_i32 = arith.constant 0 : i32
    %c0_i32_0 = arith.constant 0 : i32
    return %arg0, %c0_i32, %arg1 : i32, i32, i32
  }
  func.func @transform_2(%arg0: i32, %arg1: i32) -> (i32, i32, i32) {
    %c0_i32 = arith.constant 0 : i32
    %c0_i32_0 = arith.constant 0 : i32
    return %arg0, %c0_i32, %arg1 : i32, i32, i32
  }
}

</mosaic_0001>

<llo_original>
// kernel: tpu_custom_call.1
$region0: #{tpu_custom_call.1}
  #allocation0 [shape = 'u32[]', space=smem, size = 0x4, offset = 0x4, fixed_abs, tag = 'smem constant byte address 0x4 - core index']
  #allocation1 [shape = 'u32[144,128]{1,0:T(1,128)}', space=vmem, size = 0x12000, scoped, tag = 'internal scratch']
  %s0 = inlined_call_operand.vmem [shape: f32[2,3,4], index: 0, kind: input, shape index: {}]
  %s1 = inlined_call_operand.vmem [shape: f32[2,4,256], index: 1, kind: input, shape index: {}]
  %s2 = inlined_call_operand.vmem [shape: f32[2,3,256], index: 2, kind: output, shape index: {}]
  %s3 = sld [smem:[#allocation0]]
  $region41: #{tpu_custom_call.1} parent=0
    _
  %s5 = ssub.s32 1, %s3
  %s6 = scalar_select 0, %s5, %s3
  loop: start=0, step=1, limit=6
  $region2: #{tpu_custom_call.1} parent=0 // loop_pre_header
    _
  $region3: #{tpu_custom_call.1} parent=0 // loop_header
    %s8 = sphi 0, %s12
    %p9 = scmp.ge.s32.totalorder %s8, 6
    %s15 = sphi 0, %s27
    %s16 = sphi 0, %s23
    %s17 = sphi 0, %s15
    %s18 = sphi 0, %s16
    %s19 = sphi 0, %s17
    %s20 = sphi 0, %s18
    %s30 = sphi 0, %s32
    %s33 = sphi 0, %s30
    %s34 = sphi 0, %s33
    %s50 = sphi 0, %s34
    %s58 = sphi 0, %s60
    %s61 = sphi 0, %s58
    %s62 = sphi 0, %s61
    %s78 = sphi 0, %s62
    %s86 = sphi 0, %s88
    %s89 = sphi 0, %s86
    %s90 = sphi 0, %s89
    %s106 = sphi 0, %s90
  $region4: #{tpu_custom_call.1} parent=0 // loop_header_branch
    %11 = sbr.rel (%p9) target = $region8
  $region5: #{tpu_custom_call.1} parent=0 // loop_body
    %s13 = ssub.s32 %s8, 1
    %s14 = ssub.s32 %s8, 2
    %s21 = sadd.s32 1, %s16
    %p22 = scmp.ge.s32.totalorder %s21, 2
    %s23 = scalar_select %p22, 0, %s21
    %s24 = sadd.s32 1, %s15
    %s25 = scalar_select %p22, %s24, %s15
    %p26 = scmp.ge.s32.totalorder %s25, 2
    %s27 = scalar_select %p26, 0, %s25
    %s28 = ssub.s32 %s15, %s27
    %p29 = scmp.eq.s32.totalorder %s28, 0
    %s31 = sadd.s32 %s30, 1
    %s32 = scalar_select %p29, %s30, %s31
    %p35 = pneg %p29
    %p36 = scmp.eq.s32.totalorder %s8, 3
    %p37 = por %p35, %p36
    %p38 = scmp.ne.s32.totalorder %s30, %s33
    %p39 = scmp.eq.s32.totalorder %s8, 0
    %p40 = por %p38, %p39
    %p41 = scmp.ne.s32.totalorder %s30, %s33
    %p42 = scmp.eq.s32.totalorder %s13, 3
    %p43 = por %p41, %p42
    %p44 = scmp.ne.s32.totalorder %s33, %s34
    %p45 = scmp.eq.s32.totalorder %s13, 0
    %p46 = por %p44, %p45
    %p47 = scmp.ne.s32.totalorder %s33, %s34
    %p48 = scmp.eq.s32.totalorder %s14, 3
    %p49 = por %p47, %p48
    %p51 = scmp.ne.s32.totalorder %s34, %s50
    %p52 = scmp.eq.s32.totalorder %s14, 0
    %p53 = por %p51, %p52
    %s54 = ssub.s32 %s15, %s27
    %s55 = ssub.s32 %s16, %s23
    %s56 = sor.u32 %s54, %s55
    %p57 = scmp.eq.s32.totalorder %s56, 0
    %s59 = sadd.s32 %s58, 1
    %s60 = scalar_select %p57, %s58, %s59
    %p63 = pneg %p57
    %p64 = scmp.eq.s32.totalorder %s8, 3
    %p65 = por %p63, %p64
    %p66 = scmp.ne.s32.totalorder %s58, %s61
    %p67 = scmp.eq.s32.totalorder %s8, 0
    %p68 = por %p66, %p67
    %p69 = scmp.ne.s32.totalorder %s58, %s61
    %p70 = scmp.eq.s32.totalorder %s13, 3
    %p71 = por %p69, %p70
    %p72 = scmp.ne.s32.totalorder %s61, %s62
    %p73 = scmp.eq.s32.totalorder %s13, 0
    %p74 = por %p72, %p73
    %p75 = scmp.ne.s32.totalorder %s61, %s62
    %p76 = scmp.eq.s32.totalorder %s14, 3
    %p77 = por %p75, %p76
    %p79 = scmp.ne.s32.totalorder %s62, %s78
    %p80 = scmp.eq.s32.totalorder %s14, 0
    %p81 = por %p79, %p80
    %s82 = ssub.s32 %s15, %s27
    %s83 = ssub.s32 %s16, %s23
    %s84 = sor.u32 %s82, %s83
    %p85 = scmp.eq.s32.totalorder %s84, 0
    %s87 = sadd.s32 %s86, 1
    %s88 = scalar_select %p85, %s86, %s87
    %p91 = pneg %p85
    %p92 = scmp.eq.s32.totalorder %s8, 3
    %p93 = por %p91, %p92
    %p94 = scmp.ne.s32.totalorder %s86, %s89
    %p95 = scmp.eq.s32.totalorder %s8, 0
    %p96 = por %p94, %p95
    %p97 = scmp.ne.s32.totalorder %s86, %s89
    %p98 = scmp.eq.s32.totalorder %s13, 3
    %p99 = por %p97, %p98
    %p100 = scmp.ne.s32.totalorder %s89, %s90
    %p101 = scmp.eq.s32.totalorder %s13, 0
    %p102 = por %p100, %p101
    %p103 = scmp.ne.s32.totalorder %s89, %s90
    %p104 = scmp.eq.s32.totalorder %s14, 3
    %p105 = por %p103, %p104
    %p107 = scmp.ne.s32.totalorder %s90, %s106
    %p108 = scmp.eq.s32.totalorder %s14, 0
    %p109 = por %p107, %p108
    %p110 = scmp.le.s32.totalorder 1, %s8
    %p111 = scmp.lt.s32.totalorder %s8, 5
    %p112 = pnand %p110, %p111
    %p113 = pneg %p112
    // Predicated region
    $region9: #{tpu_custom_call.1} parent=5 // pred_check
      _
    $region10: #{tpu_custom_call.1} parent=5 // pred_check_branch
      %115 = sbr.rel (%p112) target = $region12
    $region11: #{tpu_custom_call.1} parent=5 // pred_region
      %s116 = ssub.s32 %s8, 1
    $region12: #{tpu_custom_call.1} parent=5 // pred_fallthru
      _
    %p117 = scmp.lt.s32.totalorder %s8, 4
    // Predicated region
    $region13: #{tpu_custom_call.1} parent=5 // pred_check
      %p118 = pneg %p117
    $region14: #{tpu_custom_call.1} parent=5 // pred_check_branch
      %120 = sbr.rel (%p118) target = $region16
    $region15: #{tpu_custom_call.1} parent=5 // pred_region
      // Predicated region
      $region17: #{tpu_custom_call.1} parent=15 // pred_check
        %p121 = pneg %p40
      $region18: #{tpu_custom_call.1} parent=15 // pred_check_branch
        %123 = sbr.rel (%p121) target = $region20
      $region19: #{tpu_custom_call.1} parent=15 // pred_region
        %p124 = scmp.lt.s32.totalorder %s15, 1
        %s125 = scalar_select %p124, %s15, 1
        %s126 = smul.addr %s125, 4
        %s127 = scalar_lea.vmem %s0, %s126
      $region20: #{tpu_custom_call.1} parent=15 // pred_fallthru
        _
      // Predicated region
      $region21: #{tpu_custom_call.1} parent=15 // pred_check
        %p128 = pneg %p68
      $region22: #{tpu_custom_call.1} parent=15 // pred_check_branch
        %130 = sbr.rel (%p128) target = $region24
      $region23: #{tpu_custom_call.1} parent=15 // pred_region
        %p131 = scmp.lt.s32.totalorder %s15, 1
        %s132 = scalar_select %p131, %s15, 1
        %p133 = scmp.lt.s32.totalorder %s16, 1
        %s134 = scalar_select %p133, %s16, 1
        %s135 = smul.addr %s132, 2
        %s136 = sadd.s32 %s134, %s135
        %s137 = smul.addr %s136, 4
        %s138 = scalar_lea.vmem %s1, %s137
      $region24: #{tpu_custom_call.1} parent=15 // pred_fallthru
        _
    $region16: #{tpu_custom_call.1} parent=5 // pred_fallthru
      _
    %p139 = scmp.le.s32.totalorder 1, %s8
    %p140 = scmp.lt.s32.totalorder %s8, 5
    %p141 = pnand %p139, %p140
    %p142 = pneg %p141
    // Predicated region
    $region25: #{tpu_custom_call.1} parent=5 // pred_check
      _
    $region26: #{tpu_custom_call.1} parent=5 // pred_check_branch
      %144 = sbr.rel (%p141) target = $region28
    $region27: #{tpu_custom_call.1} parent=5 // pred_region
      %s145 = ssub.s32 %s8, 1
      %p146 = scmp.lt.s32.totalorder %s17, 1
      %s147 = scalar_select %p146, %s17, 1
      %s148 = smul.addr %s147, 4
      %s149 = scalar_lea.vmem %s0, %s148
      %p150 = pneg %p46
      %p151 = pneg %p43
      %p152 = scmp.lt.s32.totalorder %s17, 1
      %s153 = scalar_select %p152, %s17, 1
      %p154 = scmp.lt.s32.totalorder %s18, 1
      %s155 = scalar_select %p154, %s18, 1
      %s156 = smul.addr %s153, 2
      %s157 = sadd.s32 %s155, %s156
      %s158 = smul.addr %s157, 4
      %s159 = scalar_lea.vmem %s1, %s158
      %p160 = pneg %p74
      %p161 = pneg %p71
      %p162 = pneg %p102
      %p163 = pneg %p99
      %p164 = scmp.lt.s32.totalorder %s17, 1
      %s165 = scalar_select %p164, %s17, 1
      %p166 = scmp.lt.s32.totalorder %s18, 1
      %s167 = scalar_select %p166, %s18, 1
      %s168 = smul.addr %s165, 2
      %s169 = sadd.s32 %s167, %s168
      %s170 = smul.addr %s169, 4
      %s171 = scalar_lea.vmem %s2, %s170
      %p172 = scmp.lt.s32.totalorder %s17, 1
      %s173 = scalar_select %p172, %s17, 1
      %s174 = smul.addr %s173, 4
      %s175 = scalar_lea.vmem %s0, %s174
      %p176 = scmp.lt.s32.totalorder %s17, 1
      %s177 = scalar_select %p176, %s17, 1
      %p178 = scmp.lt.s32.totalorder %s18, 1
      %s179 = scalar_select %p178, %s18, 1
      %s180 = smul.addr %s177, 2
      %s181 = sadd.s32 %s179, %s180
      %s182 = smul.addr %s181, 4
      %s183 = scalar_lea.vmem %s1, %s182
      %p184 = scmp.lt.s32.totalorder %s17, 1
      %s185 = scalar_select %p184, %s17, 1
      %p186 = scmp.lt.s32.totalorder %s18, 1
      %s187 = scalar_select %p186, %s18, 1
      %s188 = smul.addr %s185, 2
      %s189 = sadd.s32 %s187, %s188
      %s190 = smul.addr %s189, 4
      %s191 = scalar_lea.vmem %s2, %s190
      %v192 = vld [vmem:[%s175] sm:$0x7]
      %v193 = vld [vmem:[%s183] sm:$0xf]
      %vm194 = vcmask 31744
      %v196 = vsel %vm194, %v192, 0
      %vm198 = vcmask 1043456
      %v200 = vsel %vm198, %v193, 0
      %202 = vmatprep.subr.mxu0 0.0
      %203 = vmatpush1.msra.mxu0 %v200
      %204 = vmatprep.subr.mxu0 0.0
      %205 = vmatpush1.msra.mxu0 0.0
      %206 = vmatprep.subr.mxu0 0.0
      %207 = vmatpush1.msra.mxu0 0.0
      %208 = vmatprep.subr.mxu0 0.0
      %209 = vmatpush1.msra.mxu0 0.0
      %210 = vmatprep.subr.mxu0 0.0
      %211 = vmatpush1.msra.mxu0 0.0
      %212 = vmatprep.subr.mxu0 0.0
      %213 = vmatpush1.msra.mxu0 0.0
      %214 = vmatprep.subr.mxu0 0.0
      %215 = vmatpush1.msra.mxu0 0.0
      %216 = vmatprep.subr.mxu0 0.0
      %217 = vmatpush1.msra.mxu0 0.0
      %218 = vmatprep.subr.mxu0 0.0
      %219 = vmatpush1.msra.mxu0 0.0
      %220 = vmatprep.subr.mxu0 0.0
      %221 = vmatpush1.msra.mxu0 0.0
      %222 = vmatprep.subr.mxu0 0.0
      %223 = vmatpush1.msra.mxu0 0.0
      %224 = vmatprep.subr.mxu0 0.0
      %225 = vmatpush1.msra.mxu0 0.0
      %226 = vmatprep.subr.mxu0 0.0
      %227 = vmatpush1.msra.mxu0 0.0
      %228 = vmatprep.subr.mxu0 0.0
      %229 = vmatpush1.msra.mxu0 0.0
      %230 = vmatprep.subr.mxu0 0.0
      %231 = vmatpush1.msra.mxu0 0.0
      %232 = vmatprep.subr.mxu0 0.0
      %233 = vmatpush1.msra.mxu0 0.0
      %234 = vmatprep.subr.mxu0 0.0
      %235 = vmatpush1.msra.mxu0 0.0
      %236 = vmatprep.subr.mxu0 0.0
      %237 = vmatpush1.msra.mxu0 0.0
      %238 = vmatprep.subr.mxu0 0.0
      %239 = vmatpush1.msra.mxu0 0.0
      %240 = vmatprep.subr.mxu0 0.0
      %241 = vmatpush1.msra.mxu0 0.0
      %242 = vmatprep.subr.mxu0 0.0
      %243 = vmatpush1.msra.mxu0 0.0
      %244 = vmatprep.subr.mxu0 0.0
      %245 = vmatpush1.msra.mxu0 0.0
      %246 = vmatprep.subr.mxu0 0.0
      %247 = vmatpush1.msra.mxu0 0.0
      %248 = vmatprep.subr.mxu0 0.0
      %249 = vmatpush1.msra.mxu0 0.0
      %250 = vmatprep.subr.mxu0 0.0
      %251 = vmatpush1.msra.mxu0 0.0
      %252 = vmatprep.subr.mxu0 0.0
      %253 = vmatpush1.msra.mxu0 0.0
      %254 = vmatprep.subr.mxu0 0.0
      %255 = vmatpush1.msra.mxu0 0.0
      %256 = vmatprep.subr.mxu0 0.0
      %257 = vmatpush1.msra.mxu0 0.0
      %258 = vmatprep.subr.mxu0 0.0
      %259 = vmatpush1.msra.mxu0 0.0
      %260 = vmatprep.subr.mxu0 0.0
      %261 = vmatpush1.msra.mxu0 0.0
      %262 = vmatprep.subr.mxu0 0.0
      %263 = vmatpush1.msra.mxu0 0.0
      %264 = vmatprep.subr.mxu0 0.0
      %265 = vmatpush1.msra.mxu0 0.0
      %266 = vmatprep.mubr.f32.mxu0 0.0
      %267 = vmatmul.mubr.f32.gmra.mrb[0].mxu0 %v196
      %v268 = vpop.f32.mrb[0].mxu0
      %v269 = vadd.f32 0.0, %v268
      %v270 = vpop.f32.mrb[0].mxu0
      %271 = vdwg.mxu0
      %272 = vst [vmem:[%s191] sm:$0x7] %v269
      %p273 = scmp.lt.s32.totalorder %s17, 1
      %s274 = scalar_select %p273, %s17, 1
      %p275 = scmp.lt.s32.totalorder %s18, 1
      %s276 = scalar_select %p275, %s18, 1
      %s277 = smul.addr %s274, 2
      %s278 = sadd.s32 %s276, %s277
      %s279 = smul.addr %s278, 4
      %s280 = scalar_lea.vmem %s2, %s279
      // Predicated region
      $region29: #{tpu_custom_call.1} parent=27 // pred_check
        %p281 = pneg %p99
      $region30: #{tpu_custom_call.1} parent=27 // pred_check_branch
        %283 = sbr.rel (%p281) target = $region32
      $region31: #{tpu_custom_call.1} parent=27 // pred_region
        _
      $region32: #{tpu_custom_call.1} parent=27 // pred_fallthru
        _
    $region28: #{tpu_custom_call.1} parent=5 // pred_fallthru
      _
    %p284 = scmp.le.s32.totalorder 2, %s8
    // Predicated region
    $region33: #{tpu_custom_call.1} parent=5 // pred_check
      %p285 = pneg %p284
    $region34: #{tpu_custom_call.1} parent=5 // pred_check_branch
      %287 = sbr.rel (%p285) target = $region36
    $region35: #{tpu_custom_call.1} parent=5 // pred_region
      %s288 = ssub.s32 %s8, 2
      // Predicated region
      $region37: #{tpu_custom_call.1} parent=35 // pred_check
        %p289 = pneg %p105
      $region38: #{tpu_custom_call.1} parent=35 // pred_check_branch
        %291 = sbr.rel (%p289) target = $region40
      $region39: #{tpu_custom_call.1} parent=35 // pred_region
        %p292 = scmp.lt.s32.totalorder %s19, 1
        %s293 = scalar_select %p292, %s19, 1
        %p294 = scmp.lt.s32.totalorder %s20, 1
        %s295 = scalar_select %p294, %s20, 1
        %s296 = smul.addr %s293, 2
        %s297 = sadd.s32 %s295, %s296
        %s298 = smul.addr %s297, 4
        %s299 = scalar_lea.vmem %s2, %s298
      $region40: #{tpu_custom_call.1} parent=35 // pred_fallthru
        _
    $region36: #{tpu_custom_call.1} parent=5 // pred_fallthru
      _
  $region6: #{tpu_custom_call.1} parent=0 // loop_footer
    %s12 = sadd.s32 1, %s8
  $region7: #{tpu_custom_call.1} parent=0 // loop_footer_branch
    %7 = sbr.rel target = $region3
  $region8: #{tpu_custom_call.1} parent=0 // loop_exit
    _

</llo_original>
